<compile_context>
chip_gen: v7x
topology: tpu7x:2x2x1
jax: 0.10.0
libtpu: 0.0.40
codegen_flags: <defaults>
</compile_context>

<pallas_src>
import functools

import jax
import jax.numpy as jnp
from jax import lax
from jax.experimental import pallas as pl
from jax.experimental.pallas import tpu as pltpu


def _round_up(x, m):
    return (x + m - 1) // m * m


def _default_tile_m():
    """Rows per M tile: bigger on v5e/v6e (128 MiB VMEM), smaller on v7x (64 MiB)."""
    try:
        kind = jax.devices()[0].device_kind.lower()
        if "v5" in kind or "v6" in kind:
            return 1024
    except Exception:
        pass
    return 512


# ----------------------------------------------------------------------------
# Pallas kernels
# ----------------------------------------------------------------------------
def _conv_matmul_silu_kernel(p_ref, w_ref, b_ref, o_ref):
    """One M-tile of  o = SiLU(p @ w + b).   p:(TM,K)  w:(K,N)  b:(1,N)  o:(TM,N)."""
    acc = jnp.dot(p_ref[...], w_ref[...], preferred_element_type=jnp.float32)
    acc = acc + b_ref[...]
    o_ref[...] = acc * jax.nn.sigmoid(acc)  # SiLU


def _conv_pool_ln_kernel(p_ref, w_ref, b_ref, g_ref, bt_ref, o_ref, acc_ref,
                         *, s_valid, tile_s, eps):
    """Fused conv3 + SiLU + AdaptiveAvgPool2d(1) + Flatten + LayerNorm.

    grid = (B, S_pad // tile_s); the spatial axis is a reduction accumulated into
    acc_ref and finalized into o_ref on the last spatial step of each batch.
      p:(1,TS,K)  w:(K,C)  b/g/bt:(1,C)  o:(1,1,C)  acc:(1,C)
    """
    s_idx = pl.program_id(1)

    @pl.when(s_idx == 0)
    def _():
        acc_ref[...] = jnp.zeros_like(acc_ref)

    y = jnp.dot(p_ref[0], w_ref[...], preferred_element_type=jnp.float32)
    y = y + b_ref[...]
    y = y * jax.nn.sigmoid(y)                                   # SiLU, (TS, C)

    # Mask spatial rows that are only zero-padding (S_pad > real S).
    row = s_idx * tile_s + lax.broadcasted_iota(jnp.int32, (tile_s, 1), 0)
    y = jnp.where(row < s_valid, y, 0.0)
    acc_ref[...] += jnp.sum(y, axis=0, keepdims=True)           # channel sums (1, C)

    @pl.when(s_idx == pl.num_programs(1) - 1)
    def _():
        pooled = acc_ref[...] * (1.0 / s_valid)                 # global average pool
        mu = jnp.mean(pooled, axis=-1, keepdims=True)           # LayerNorm over C
        var = jnp.mean((pooled - mu) ** 2, axis=-1, keepdims=True)
        normed = (pooled - mu) * lax.rsqrt(var + eps)
        o_ref[...] = (normed * g_ref[...] + bt_ref[...]).reshape(o_ref.shape)


# ----------------------------------------------------------------------------
# Wrappers (glue: im2col, weight reshaping, pallas_call setup)
# ----------------------------------------------------------------------------
def _im2col(x_nhwc, k=3, stride=2, pad=1):
    """x:(B,H,W,C) -> patches:(B, Ho, Wo, k*k*C) ordered (kh, kw, cin)."""
    B, H, W, C = x_nhwc.shape
    xp = jnp.pad(x_nhwc, ((0, 0), (pad, pad), (pad, pad), (0, 0)))
    Ho = (H + 2 * pad - k) // stride + 1
    Wo = (W + 2 * pad - k) // stride + 1
    cols = []
    for kh in range(k):
        for kw in range(k):
            cols.append(xp[:, kh:kh + stride * Ho:stride, kw:kw + stride * Wo:stride, :])
    return jnp.concatenate(cols, axis=-1), Ho, Wo


def _weights_2d(w_oihw):
    """(Cout, Cin, kh, kw) -> (kh*kw*Cin, Cout) matching the im2col patch ordering."""
    Cout, Cin, k, _ = w_oihw.shape
    return jnp.transpose(w_oihw, (2, 3, 1, 0)).reshape(k * k * Cin, Cout)


def conv2d_silu(x_nhwc, w_oihw, bias, *, stride=2, pad=1, tile_m=None):
    """Conv2d(k=3, stride, pad) + SiLU via an M-tiled Pallas matmul kernel. Returns NHWC."""
    if tile_m is None:
        tile_m = _default_tile_m()
    B = x_nhwc.shape[0]
    Cout, Cin, k, _ = w_oihw.shape
    patches, Ho, Wo = _im2col(x_nhwc, k=k, stride=stride, pad=pad)
    K = k * k * Cin
    M = B * Ho * Wo
    patches = patches.reshape(M, K)

    tm = min(tile_m, _round_up(M, 8))
    M_pad = _round_up(M, tm)
    if M_pad != M:
        patches = jnp.pad(patches, ((0, M_pad - M), (0, 0)))

    w2d = _weights_2d(w_oihw)
    b2d = bias.reshape(1, Cout)

    out = pl.pallas_call(
        _conv_matmul_silu_kernel,
        out_shape=jax.ShapeDtypeStruct((M_pad, Cout), jnp.float32),
        grid=(M_pad // tm,),
        in_specs=[
            pl.BlockSpec((tm, K), lambda i: (i, 0)),
            pl.BlockSpec((K, Cout), lambda i: (0, 0)),
            pl.BlockSpec((1, Cout), lambda i: (0, 0)),
        ],
        out_specs=pl.BlockSpec((tm, Cout), lambda i: (i, 0)),
        compiler_params=pltpu.CompilerParams(
            dimension_semantics=("parallel",)),
    )(patches, w2d, b2d)
    return out[:M].reshape(B, Ho, Wo, Cout)


def conv3_silu_pool_layernorm(x_nhwc, w_oihw, bias, gamma, beta, *,
                              stride=2, pad=1, tile_s=None, eps=1e-5):
    """Fused conv3+SiLU+AdaptiveAvgPool2d(1)+Flatten+LayerNorm. Returns (B, Cout)."""
    if tile_s is None:
        tile_s = _default_tile_m()
    B = x_nhwc.shape[0]
    Cout, Cin, k, _ = w_oihw.shape
    patches, Ho, Wo = _im2col(x_nhwc, k=k, stride=stride, pad=pad)
    K = k * k * Cin
    S = Ho * Wo
    patches = patches.reshape(B, S, K)

    ts = min(tile_s, _round_up(S, 8))
    S_pad = _round_up(S, ts)
    if S_pad != S:
        patches = jnp.pad(patches, ((0, 0), (0, S_pad - S), (0, 0)))

    w2d = _weights_2d(w_oihw)
    b2d = bias.reshape(1, Cout)
    g2d = gamma.reshape(1, Cout)
    bt2d = beta.reshape(1, Cout)

    kernel = functools.partial(_conv_pool_ln_kernel, s_valid=S, tile_s=ts, eps=eps)

    out = pl.pallas_call(
        kernel,
        out_shape=jax.ShapeDtypeStruct((B, 1, Cout), jnp.float32),
        grid=(B, S_pad // ts),
        in_specs=[
            pl.BlockSpec((1, ts, K), lambda b, s: (b, s, 0)),
            pl.BlockSpec((K, Cout), lambda b, s: (0, 0)),
            pl.BlockSpec((1, Cout), lambda b, s: (0, 0)),
            pl.BlockSpec((1, Cout), lambda b, s: (0, 0)),
            pl.BlockSpec((1, Cout), lambda b, s: (0, 0)),
        ],
        out_specs=pl.BlockSpec((1, 1, Cout), lambda b, s: (b, 0, 0)),
        scratch_shapes=[pltpu.VMEM((1, Cout), jnp.float32)],
        compiler_params=pltpu.CompilerParams(
            dimension_semantics=("parallel", "arbitrary")),
    )(patches, w2d, b2d, g2d, bt2d)
    return out.reshape(B, Cout)


# ----------------------------------------------------------------------------
# Parameter init (deterministic, synthetic) and full forward
# ----------------------------------------------------------------------------
def init_params(key):
    ks = jax.random.split(key, 6)

    def conv_init(kw, kb, cout, cin, k=3):
        scale = 1.0 / jnp.sqrt(cin * k * k)
        w = jax.random.uniform(kw, (cout, cin, k, k), jnp.float32, -scale, scale)
        b = jax.random.uniform(kb, (cout,), jnp.float32, -scale, scale)
        return w, b

    w1, b1 = conv_init(ks[0], ks[1], 16, 3)
    w2, b2 = conv_init(ks[2], ks[3], 32, 16)
    w3, b3 = conv_init(ks[4], ks[5], 64, 32)
    ln_g = jnp.ones((64,), jnp.float32)
    ln_b = jnp.zeros((64,), jnp.float32)
    return dict(w1=w1, b1=b1, w2=w2, b2=b2, w3=w3, b3=b3, ln_g=ln_g, ln_b=ln_b)


@jax.jit
def image_encoder_forward(params, x_nchw):
    """x_nchw: (B, 3, H, W) -> (B, 64)."""
    x = jnp.transpose(x_nchw, (0, 2, 3, 1))                       # NCHW -> NHWC
    x = conv2d_silu(x, params["w1"], params["b1"])                # (B, H/2, W/2, 16)
    x = conv2d_silu(x, params["w2"], params["b2"])                # (B, H/4, W/4, 32)
    return conv3_silu_pool_layernorm(                             # (B, 64)
        x, params["w3"], params["b3"], params["ln_g"], params["ln_b"])


def reference_forward(params, x_nchw):
    """Plain-JAX reference (matches the PyTorch module semantics)."""
    def conv(x, w, b):
        y = lax.conv_general_dilated(
            x, w, window_strides=(2, 2), padding=((1, 1), (1, 1)),
            dimension_numbers=("NCHW", "OIHW", "NCHW"))
        y = y + b[None, :, None, None]
        return y * jax.nn.sigmoid(y)

    x = conv(x_nchw, params["w1"], params["b1"])
    x = conv(x, params["w2"], params["b2"])
    x = conv(x, params["w3"], params["b3"])
    pooled = jnp.mean(x, axis=(2, 3))                             # AvgPool(1) + Flatten
    mu = jnp.mean(pooled, axis=-1, keepdims=True)
    var = jnp.mean((pooled - mu) ** 2, axis=-1, keepdims=True)
    return (pooled - mu) / jnp.sqrt(var + 1e-5) * params["ln_g"] + params["ln_b"]


if __name__ == "__main__":
    key = jax.random.PRNGKey(0)
    k_param, k_x = jax.random.split(key)
    params = init_params(k_param)

    B, C, H, W = 2, 3, 16, 16
    x = jax.random.normal(k_x, (B, C, H, W), jnp.float32)

    out = image_encoder_forward(params, x)
    out = jax.block_until_ready(out)
    assert out.shape == (B, 64), out.shape

    ref = jax.block_until_ready(reference_forward(params, x))
    assert jnp.allclose(out, ref, atol=1e-4, rtol=1e-4), float(jnp.max(jnp.abs(out - ref)))

    print("KERNEL_OK")
</pallas_src>

<mosaic_0001>
module attributes {stable_mosaic.version = 11 : i64} {
  func.func @_conv_matmul_silu_kernel(%arg0: i32, %arg1: memref<128x27xf32, #tpu.memory_space<vmem>>, %arg2: memref<27x16xf32, #tpu.memory_space<vmem>>, %arg3: memref<1x16xf32, #tpu.memory_space<vmem>>, %arg4: memref<128x16xf32, #tpu.memory_space<vmem>>) attributes {dimension_semantics = [#tpu.dimension_semantics<parallel>], iteration_bounds = array<i64: 1>, scalar_prefetch = 0 : i64, scratch_operands = 0 : i64, tpu.core_type = #tpu.core_type<tc>, window_params = [{transform_indices = @transform_0, window_bounds = array<i64: 128, 27>}, {pipeline_mode = #tpu.pipeline_mode<synchronous>, transform_indices = @transform_1, window_bounds = array<i64: 27, 16>}, {pipeline_mode = #tpu.pipeline_mode<synchronous>, transform_indices = @transform_2, window_bounds = array<i64: 1, 16>}, {transform_indices = @transform_3, window_bounds = array<i64: 128, 16>}]} {
    %c0 = arith.constant 0 : index
    %c0_0 = arith.constant 0 : index
    %0 = vector.load %arg1[%c0, %c0_0] : memref<128x27xf32, #tpu.memory_space<vmem>>, vector<128x27xf32>
    %c0_1 = arith.constant 0 : index
    %c0_2 = arith.constant 0 : index
    %1 = vector.load %arg2[%c0_1, %c0_2] : memref<27x16xf32, #tpu.memory_space<vmem>>, vector<27x16xf32>
    %cst = arith.constant dense<0.000000e+00> : vector<128x16xf32>
    %2 = tpu.matmul %0, %1, %cst {dimension_numbers = #tpu.dot_dimension_numbers<[1], [0], [0], [1], [0, 0, 1, 1], [], []>} : vector<128x27xf32>, vector<27x16xf32>, vector<128x16xf32> -> vector<128x16xf32>
    %c0_3 = arith.constant 0 : index
    %c0_4 = arith.constant 0 : index
    %3 = vector.load %arg3[%c0_3, %c0_4] : memref<1x16xf32, #tpu.memory_space<vmem>>, vector<1x16xf32>
    %4 = vector.broadcast %3 : vector<1x16xf32> to vector<128x16xf32>
    %5 = arith.addf %2, %4 : vector<128x16xf32>
    %6 = arith.negf %5 : vector<128x16xf32>
    %7 = math.exp %6 : vector<128x16xf32>
    %cst_5 = arith.constant 1.000000e+00 : f32
    %8 = vector.broadcast %cst_5 : f32 to vector<128x16xf32>
    %9 = arith.addf %8, %7 : vector<128x16xf32>
    %10 = arith.divf %8, %9 : vector<128x16xf32>
    %11 = arith.mulf %5, %10 : vector<128x16xf32>
    %c0_6 = arith.constant 0 : index
    %c0_7 = arith.constant 0 : index
    %12 = vector.load %arg4[%c0_6, %c0_7] : memref<128x16xf32, #tpu.memory_space<vmem>>, vector<128x16xf32>
    tpu.vector_store %arg4[%c0_6, %c0_7], %11 {strides = array<i32>} : memref<128x16xf32, #tpu.memory_space<vmem>>, vector<128x16xf32>,
    return
  }
  func.func @transform_0(%arg0: i32) -> (i32, i32) {
    %c0_i32 = arith.constant 0 : i32
    %c0_i32_0 = arith.constant 0 : i32
    return %arg0, %c0_i32 : i32, i32
  }
  func.func @transform_1(%arg0: i32) -> (i32, i32) {
    %c0_i32 = arith.constant 0 : i32
    %c0_i32_0 = arith.constant 0 : i32
    %c0_i32_1 = arith.constant 0 : i32
    return %c0_i32, %c0_i32_0 : i32, i32
  }
  func.func @transform_2(%arg0: i32) -> (i32, i32) {
    %c0_i32 = arith.constant 0 : i32
    %c0_i32_0 = arith.constant 0 : i32
    %c0_i32_1 = arith.constant 0 : i32
    return %c0_i32, %c0_i32_0 : i32, i32
  }
  func.func @transform_3(%arg0: i32) -> (i32, i32) {
    %c0_i32 = arith.constant 0 : i32
    %c0_i32_0 = arith.constant 0 : i32
    return %arg0, %c0_i32 : i32, i32
  }
}

module attributes {stable_mosaic.version = 11 : i64} {
  func.func @_conv_matmul_silu_kernel(%arg0: i32, %arg1: memref<32x144xf32, #tpu.memory_space<vmem>>, %arg2: memref<144x32xf32, #tpu.memory_space<vmem>>, %arg3: memref<1x32xf32, #tpu.memory_space<vmem>>, %arg4: memref<32x32xf32, #tpu.memory_space<vmem>>) attributes {dimension_semantics = [#tpu.dimension_semantics<parallel>], iteration_bounds = array<i64: 1>, scalar_prefetch = 0 : i64, scratch_operands = 0 : i64, tpu.core_type = #tpu.core_type<tc>, window_params = [{transform_indices = @transform_0, window_bounds = array<i64: 32, 144>}, {pipeline_mode = #tpu.pipeline_mode<synchronous>, transform_indices = @transform_1, window_bounds = array<i64: 144, 32>}, {pipeline_mode = #tpu.pipeline_mode<synchronous>, transform_indices = @transform_2, window_bounds = array<i64: 1, 32>}, {transform_indices = @transform_3, window_bounds = array<i64: 32, 32>}]} {
    %c0 = arith.constant 0 : index
    %c0_0 = arith.constant 0 : index
    %0 = vector.load %arg1[%c0, %c0_0] : memref<32x144xf32, #tpu.memory_space<vmem>>, vector<32x144xf32>
    %c0_1 = arith.constant 0 : index
    %c0_2 = arith.constant 0 : index
    %1 = vector.load %arg2[%c0_1, %c0_2] : memref<144x32xf32, #tpu.memory_space<vmem>>, vector<144x32xf32>
    %cst = arith.constant dense<0.000000e+00> : vector<32x32xf32>
    %2 = tpu.matmul %0, %1, %cst {dimension_numbers = #tpu.dot_dimension_numbers<[1], [0], [0], [1], [0, 0, 1, 1], [], []>} : vector<32x144xf32>, vector<144x32xf32>, vector<32x32xf32> -> vector<32x32xf32>
    %c0_3 = arith.constant 0 : index
    %c0_4 = arith.constant 0 : index
    %3 = vector.load %arg3[%c0_3, %c0_4] : memref<1x32xf32, #tpu.memory_space<vmem>>, vector<1x32xf32>
    %4 = vector.broadcast %3 : vector<1x32xf32> to vector<32x32xf32>
    %5 = arith.addf %2, %4 : vector<32x32xf32>
    %6 = arith.negf %5 : vector<32x32xf32>
    %7 = math.exp %6 : vector<32x32xf32>
    %cst_5 = arith.constant 1.000000e+00 : f32
    %8 = vector.broadcast %cst_5 : f32 to vector<32x32xf32>
    %9 = arith.addf %8, %7 : vector<32x32xf32>
    %10 = arith.divf %8, %9 : vector<32x32xf32>
    %11 = arith.mulf %5, %10 : vector<32x32xf32>
    %c0_6 = arith.constant 0 : index
    %c0_7 = arith.constant 0 : index
    %12 = vector.load %arg4[%c0_6, %c0_7] : memref<32x32xf32, #tpu.memory_space<vmem>>, vector<32x32xf32>
    tpu.vector_store %arg4[%c0_6, %c0_7], %11 {strides = array<i32>} : memref<32x32xf32, #tpu.memory_space<vmem>>, vector<32x32xf32>,
    return
  }
  func.func @transform_0(%arg0: i32) -> (i32, i32) {
    %c0_i32 = arith.constant 0 : i32
    %c0_i32_0 = arith.constant 0 : i32
    return %arg0, %c0_i32 : i32, i32
  }
  func.func @transform_1(%arg0: i32) -> (i32, i32) {
    %c0_i32 = arith.constant 0 : i32
    %c0_i32_0 = arith.constant 0 : i32
    %c0_i32_1 = arith.constant 0 : i32
    return %c0_i32, %c0_i32_0 : i32, i32
  }
  func.func @transform_2(%arg0: i32) -> (i32, i32) {
    %c0_i32 = arith.constant 0 : i32
    %c0_i32_0 = arith.constant 0 : i32
    %c0_i32_1 = arith.constant 0 : i32
    return %c0_i32, %c0_i32_0 : i32, i32
  }
  func.func @transform_3(%arg0: i32) -> (i32, i32) {
    %c0_i32 = arith.constant 0 : i32
    %c0_i32_0 = arith.constant 0 : i32
    return %arg0, %c0_i32 : i32, i32
  }
}

module attributes {stable_mosaic.version = 11 : i64} {
  func.func @_conv_pool_ln_kernel(%arg0: i32, %arg1: i32, %arg2: memref<1x8x288xf32, #tpu.memory_space<vmem>>, %arg3: memref<288x64xf32, #tpu.memory_space<vmem>>, %arg4: memref<1x64xf32, #tpu.memory_space<vmem>>, %arg5: memref<1x64xf32, #tpu.memory_space<vmem>>, %arg6: memref<1x64xf32, #tpu.memory_space<vmem>>, %arg7: memref<1x1x64xf32, #tpu.memory_space<vmem>>, %arg8: memref<1x64xf32, #tpu.memory_space<vmem>>) attributes {dimension_semantics = [#tpu.dimension_semantics<parallel>, #tpu.dimension_semantics<arbitrary>], iteration_bounds = array<i64: 2, 1>, scalar_prefetch = 0 : i64, scratch_operands = 1 : i64, tpu.core_type = #tpu.core_type<tc>, window_params = [{transform_indices = @transform_0, window_bounds = array<i64: 1, 8, 288>}, {pipeline_mode = #tpu.pipeline_mode<synchronous>, transform_indices = @transform_1, window_bounds = array<i64: 288, 64>}, {pipeline_mode = #tpu.pipeline_mode<synchronous>, transform_indices = @transform_2, window_bounds = array<i64: 1, 64>}, {pipeline_mode = #tpu.pipeline_mode<synchronous>, transform_indices = @transform_3, window_bounds = array<i64: 1, 64>}, {pipeline_mode = #tpu.pipeline_mode<synchronous>, transform_indices = @transform_4, window_bounds = array<i64: 1, 64>}, {transform_indices = @transform_5, window_bounds = array<i64: 1, 1, 64>}]} {
    %c0_i32 = arith.constant 0 : i32
    %0 = arith.cmpi eq, %arg1, %c0_i32 : i32
    %1 = arith.extui %0 : i1 to i32
    %c0_i32_0 = arith.constant 0 : i32
    %2 = arith.cmpi ne, %1, %c0_i32_0 : i32
    scf.if %2 {
      %cst_16 = arith.constant 0.000000e+00 : f32
      %34 = vector.broadcast %cst_16 : f32 to vector<1x64xf32>
      %c0_17 = arith.constant 0 : index
      %c0_18 = arith.constant 0 : index
      %35 = vector.load %arg8[%c0_17, %c0_18] : memref<1x64xf32, #tpu.memory_space<vmem>>, vector<1x64xf32>
      tpu.vector_store %arg8[%c0_17, %c0_18], %34 {strides = array<i32>} : memref<1x64xf32, #tpu.memory_space<vmem>>, vector<1x64xf32>,
    } else {
    }
    %c0 = arith.constant 0 : index
    %c0_1 = arith.constant 0 : index
    %c0_2 = arith.constant 0 : index
    %3 = vector.load %arg2[%c0, %c0_1, %c0_2] : memref<1x8x288xf32, #tpu.memory_space<vmem>>, vector<1x8x288xf32>
    %4 = vector.shape_cast %3 : vector<1x8x288xf32> to vector<8x288xf32>
    %c0_3 = arith.constant 0 : index
    %c0_4 = arith.constant 0 : index
    %5 = vector.load %arg3[%c0_3, %c0_4] : memref<288x64xf32, #tpu.memory_space<vmem>>, vector<288x64xf32>
    %cst = arith.constant dense<0.000000e+00> : vector<8x64xf32>
    %6 = tpu.matmul %4, %5, %cst {dimension_numbers = #tpu.dot_dimension_numbers<[1], [0], [0], [1], [0, 0, 1, 1], [], []>} : vector<8x288xf32>, vector<288x64xf32>, vector<8x64xf32> -> vector<8x64xf32>
    %c0_5 = arith.constant 0 : index
    %c0_6 = arith.constant 0 : index
    %7 = vector.load %arg4[%c0_5, %c0_6] : memref<1x64xf32, #tpu.memory_space<vmem>>, vector<1x64xf32>
    %8 = vector.broadcast %7 : vector<1x64xf32> to vector<8x64xf32>
    %9 = arith.addf %6, %8 : vector<8x64xf32>
    %10 = arith.negf %9 : vector<8x64xf32>
    %11 = math.exp %10 : vector<8x64xf32>
    %cst_7 = arith.constant 1.000000e+00 : f32
    %12 = vector.broadcast %cst_7 : f32 to vector<8x64xf32>
    %13 = arith.addf %12, %11 : vector<8x64xf32>
    %14 = arith.divf %12, %13 : vector<8x64xf32>
    %15 = arith.mulf %9, %14 : vector<8x64xf32>
    %c8_i32 = arith.constant 8 : i32
    %16 = arith.muli %arg1, %c8_i32 : i32
    %17 = tpu.iota {dimensions = array<i32: 0>} : vector<8x1xi32>
    %18 = vector.broadcast %16 : i32 to vector<8x1xi32>
    %19 = arith.addi %18, %17 : vector<8x1xi32>
    %c4_i32 = arith.constant 4 : i32
    %20 = vector.broadcast %c4_i32 : i32 to vector<8x1xi32>
    %21 = arith.cmpi slt, %19, %20 : vector<8x1xi32>
    %cst_8 = arith.constant 0.000000e+00 : f32
    %22 = vector.shape_cast %21 : vector<8x1xi1> to vector<8x1xi1>
    %23 = vector.broadcast %22 : vector<8x1xi1> to vector<8x64xi1>
    %24 = vector.broadcast %cst_8 : f32 to vector<8x64xf32>
    %25 = arith.select %23, %15, %24 : vector<8x64xi1>, vector<8x64xf32>
    %c0_9 = arith.constant 0 : index
    %c0_10 = arith.constant 0 : index
    %26 = vector.load %arg8[%c0_9, %c0_10] : memref<1x64xf32, #tpu.memory_space<vmem>>, vector<1x64xf32>
    %cst_11 = arith.constant dense<0.000000e+00> : vector<64xf32>
    %27 = vector.multi_reduction <add>, %25, %cst_11 [0] : vector<8x64xf32> to vector<64xf32>
    %28 = vector.shape_cast %27 : vector<64xf32> to vector<1x64xf32>
    %29 = arith.addf %26, %28 : vector<1x64xf32>
    %c0_12 = arith.constant 0 : index
    %c0_13 = arith.constant 0 : index
    %30 = vector.load %arg8[%c0_12, %c0_13] : memref<1x64xf32, #tpu.memory_space<vmem>>, vector<1x64xf32>
    tpu.vector_store %arg8[%c0_12, %c0_13], %29 {strides = array<i32>} : memref<1x64xf32, #tpu.memory_space<vmem>>, vector<1x64xf32>,
    %c0_i32_14 = arith.constant 0 : i32
    %31 = arith.cmpi eq, %arg1, %c0_i32_14 : i32
    %32 = arith.extui %31 : i1 to i32
    %c0_i32_15 = arith.constant 0 : i32
    %33 = arith.cmpi ne, %32, %c0_i32_15 : i32
    scf.if %33 {
      %c0_16 = arith.constant 0 : index
      %c0_17 = arith.constant 0 : index
      %34 = vector.load %arg8[%c0_16, %c0_17] : memref<1x64xf32, #tpu.memory_space<vmem>>, vector<1x64xf32>
      %cst_18 = arith.constant 2.500000e-01 : f32
      %35 = vector.broadcast %cst_18 : f32 to vector<1x64xf32>
      %36 = arith.mulf %34, %35 : vector<1x64xf32>
      %cst_19 = arith.constant dense<0.000000e+00> : vector<1xf32>
      %37 = vector.multi_reduction <add>, %36, %cst_19 [1] : vector<1x64xf32> to vector<1xf32>
      %38 = vector.shape_cast %37 : vector<1xf32> to vector<1x1xf32>
      %cst_20 = arith.constant 6.400000e+01 : f32
      %39 = vector.broadcast %cst_20 : f32 to vector<1x1xf32>
      %40 = arith.divf %38, %39 : vector<1x1xf32>
      %41 = vector.broadcast %40 : vector<1x1xf32> to vector<1x64xf32>
      %42 = arith.subf %36, %41 : vector<1x64xf32>
      %43 = arith.mulf %42, %42 : vector<1x64xf32>
      %cst_21 = arith.constant dense<0.000000e+00> : vector<1xf32>
      %44 = vector.multi_reduction <add>, %43, %cst_21 [1] : vector<1x64xf32> to vector<1xf32>
      %45 = vector.shape_cast %44 : vector<1xf32> to vector<1x1xf32>
      %cst_22 = arith.constant 6.400000e+01 : f32
      %46 = vector.broadcast %cst_22 : f32 to vector<1x1xf32>
      %47 = arith.divf %45, %46 : vector<1x1xf32>
      %48 = vector.broadcast %40 : vector<1x1xf32> to vector<1x64xf32>
      %49 = arith.subf %36, %48 : vector<1x64xf32>
      %cst_23 = arith.constant 9.99999974E-6 : f32
      %50 = vector.broadcast %cst_23 : f32 to vector<1x1xf32>
      %51 = arith.addf %47, %50 : vector<1x1xf32>
      %52 = math.rsqrt %51 : vector<1x1xf32>
      %53 = vector.broadcast %52 : vector<1x1xf32> to vector<1x64xf32>
      %54 = arith.mulf %49, %53 : vector<1x64xf32>
      %c0_24 = arith.constant 0 : index
      %c0_25 = arith.constant 0 : index
      %55 = vector.load %arg5[%c0_24, %c0_25] : memref<1x64xf32, #tpu.memory_space<vmem>>, vector<1x64xf32>
      %56 = arith.mulf %54, %55 : vector<1x64xf32>
      %c0_26 = arith.constant 0 : index
      %c0_27 = arith.constant 0 : index
      %57 = vector.load %arg6[%c0_26, %c0_27] : memref<1x64xf32, #tpu.memory_space<vmem>>, vector<1x64xf32>
      %58 = arith.addf %56, %57 : vector<1x64xf32>
      %59 = vector.shape_cast %58 : vector<1x64xf32> to vector<1x1x64xf32>
      %c0_28 = arith.constant 0 : index
      %c0_29 = arith.constant 0 : index
      %c0_30 = arith.constant 0 : index
      %60 = vector.load %arg7[%c0_28, %c0_29, %c0_30] : memref<1x1x64xf32, #tpu.memory_space<vmem>>, vector<1x1x64xf32>
      tpu.vector_store %arg7[%c0_28, %c0_29, %c0_30], %59 {strides = array<i32>} : memref<1x1x64xf32, #tpu.memory_space<vmem>>, vector<1x1x64xf32>,
    } else {
    }
    return
  }
  func.func @transform_0(%arg0: i32, %arg1: i32) -> (i32, i32, i32) {
    %c0_i32 = arith.constant 0 : i32
    %c0_i32_0 = arith.constant 0 : i32
    return %arg0, %arg1, %c0_i32 : i32, i32, i32
  }
  func.func @transform_1(%arg0: i32, %arg1: i32) -> (i32, i32) {
    %c0_i32 = arith.constant 0 : i32
    %c0_i32_0 = arith.constant 0 : i32
    %c0_i32_1 = arith.constant 0 : i32
    return %c0_i32, %c0_i32_0 : i32, i32
  }
  func.func @transform_2(%arg0: i32, %arg1: i32) -> (i32, i32) {
    %c0_i32 = arith.constant 0 : i32
    %c0_i32_0 = arith.constant 0 : i32
    %c0_i32_1 = arith.constant 0 : i32
    return %c0_i32, %c0_i32_0 : i32, i32
  }
  func.func @transform_3(%arg0: i32, %arg1: i32) -> (i32, i32) {
    %c0_i32 = arith.constant 0 : i32
    %c0_i32_0 = arith.constant 0 : i32
    %c0_i32_1 = arith.constant 0 : i32
    return %c0_i32, %c0_i32_0 : i32, i32
  }
  func.func @transform_4(%arg0: i32, %arg1: i32) -> (i32, i32) {
    %c0_i32 = arith.constant 0 : i32
    %c0_i32_0 = arith.constant 0 : i32
    %c0_i32_1 = arith.constant 0 : i32
    return %c0_i32, %c0_i32_0 : i32, i32
  }
  func.func @transform_5(%arg0: i32, %arg1: i32) -> (i32, i32, i32) {
    %c0_i32 = arith.constant 0 : i32
    %c0_i32_0 = arith.constant 0 : i32
    %c0_i32_1 = arith.constant 0 : i32
    return %arg0, %c0_i32, %c0_i32_0 : i32, i32, i32
  }
}

</mosaic_0001>

<llo_original>
// kernel: image_encoder_forward.3
$region0: #{image_encoder_forward.3}
  #allocation0 [shape = 'u32[]', space=smem, size = 0x4, offset = 0x4, fixed_abs, tag = 'smem constant byte address 0x4 - core index']
  #allocation1 [shape = 'u32[144,128]{1,0:T(1,128)}', space=vmem, size = 0x12000, scoped, tag = 'internal scratch']
  %s0 = inlined_call_operand.vmem [shape: f32[128,27], index: 0, kind: input, shape index: {}]
  %s1 = inlined_call_operand.vmem [shape: f32[27,16], index: 1, kind: input, shape index: {}]
  %s2 = inlined_call_operand.vmem [shape: f32[1,16], index: 2, kind: input, shape index: {}]
  %s3 = inlined_call_operand.vmem [shape: f32[128,16], index: 3, kind: output, shape index: {}]
  %s4 = sld [smem:[#allocation0]]
  $region22: #{image_encoder_forward.3} parent=0
    _
  %s6 = ssub.s32 1, %s4
  %s7 = scalar_select 0, %s6, %s4
  // Predicated region
  $region2: #{image_encoder_forward.3} parent=0 // pred_check
    _
  $region3: #{image_encoder_forward.3} parent=0 // pred_check_branch
    %9 = sbr.rel (0) target = $region5
  $region4: #{image_encoder_forward.3} parent=0 // pred_region
    _
  $region5: #{image_encoder_forward.3} parent=0 // pred_fallthru
    _
  // Predicated region
  $region6: #{image_encoder_forward.3} parent=0 // pred_check
    _
  $region7: #{image_encoder_forward.3} parent=0 // pred_check_branch
    %11 = sbr.rel (0) target = $region9
  $region8: #{image_encoder_forward.3} parent=0 // pred_region
    _
  $region9: #{image_encoder_forward.3} parent=0 // pred_fallthru
    _
  // Predicated region
  $region10: #{image_encoder_forward.3} parent=0 // pred_check
    _
  $region11: #{image_encoder_forward.3} parent=0 // pred_check_branch
    %13 = sbr.rel (0) target = $region13
  $region12: #{image_encoder_forward.3} parent=0 // pred_region
    _
  $region13: #{image_encoder_forward.3} parent=0 // pred_fallthru
    _
  %v14 = vld [vmem:[%s0] sm:$0xff]
  %v15 = vld [vmem:[%s0 + $0x8] sm:$0xff]
  %v16 = vld [vmem:[%s0 + $0x10] sm:$0xff]
  %v17 = vld [vmem:[%s0 + $0x18] sm:$0xff]
  %v18 = vld [vmem:[%s0 + $0x20] sm:$0xff]
  %v19 = vld [vmem:[%s0 + $0x28] sm:$0xff]
  %v20 = vld [vmem:[%s0 + $0x30] sm:$0xff]
  %v21 = vld [vmem:[%s0 + $0x38] sm:$0xff]
  %v22 = vld [vmem:[%s0 + $0x40] sm:$0xff]
  %v23 = vld [vmem:[%s0 + $0x48] sm:$0xff]
  %v24 = vld [vmem:[%s0 + $0x50] sm:$0xff]
  %v25 = vld [vmem:[%s0 + $0x58] sm:$0xff]
  %v26 = vld [vmem:[%s0 + $0x60] sm:$0xff]
  %v27 = vld [vmem:[%s0 + $0x68] sm:$0xff]
  %v28 = vld [vmem:[%s0 + $0x70] sm:$0xff]
  %v29 = vld [vmem:[%s0 + $0x78] sm:$0xff]
  %v30 = vld [vmem:[%s1] sm:$0xff]
  %v31 = vld [vmem:[%s1 + $0x8] sm:$0xff]
  %v32 = vld [vmem:[%s1 + $0x10] sm:$0xff]
  %v33 = vld [vmem:[%s1 + $0x18] sm:$0x7]
  %v34 = vld [vmem:[%s2] sm:$0x1]
  %v36 = vlaneseq
  %v37 = vshrl.u32 %v36, 7
  %v38 = vsub.s32 0, %v37
  %v39 = vrot.slane %v34, %v38
  %vm41 = vcmask 220160
  %v43 = vsel %vm41, %v14, 0
  %v46 = vsel %vm41, %v15, 0
  %v49 = vsel %vm41, %v16, 0
  %v52 = vsel %vm41, %v17, 0
  %v55 = vsel %vm41, %v18, 0
  %v58 = vsel %vm41, %v19, 0
  %v61 = vsel %vm41, %v20, 0
  %v64 = vsel %vm41, %v21, 0
  %v67 = vsel %vm41, %v22, 0
  %v70 = vsel %vm41, %v23, 0
  %v73 = vsel %vm41, %v24, 0
  %v76 = vsel %vm41, %v25, 0
  %v79 = vsel %vm41, %v26, 0
  %v82 = vsel %vm41, %v27, 0
  %v85 = vsel %vm41, %v28, 0
  %v88 = vsel %vm41, %v29, 0
  %vm90 = vcmask 1042432
  %v92 = vsel %vm90, %v33, 0
  %94 = vmatprep.subr.mxu0 0.0
  %95 = vmatpush1.msra.mxu0 %v30
  %96 = vmatprep.subr.mxu0 0.0
  %97 = vmatpush1.msra.mxu0 %v31
  %98 = vmatprep.subr.mxu0 0.0
  %99 = vmatpush1.msra.mxu0 %v32
  %100 = vmatprep.subr.mxu0 0.0
  %101 = vmatpush1.msra.mxu0 %v92
  %102 = vmatprep.subr.mxu0 0.0
  %103 = vmatpush1.msra.mxu0 0.0
  %104 = vmatprep.subr.mxu0 0.0
  %105 = vmatpush1.msra.mxu0 0.0
  %106 = vmatprep.subr.mxu0 0.0
  %107 = vmatpush1.msra.mxu0 0.0
  %108 = vmatprep.subr.mxu0 0.0
  %109 = vmatpush1.msra.mxu0 0.0
  %110 = vmatprep.subr.mxu0 0.0
  %111 = vmatpush1.msra.mxu0 0.0
  %112 = vmatprep.subr.mxu0 0.0
  %113 = vmatpush1.msra.mxu0 0.0
  %114 = vmatprep.subr.mxu0 0.0
  %115 = vmatpush1.msra.mxu0 0.0
  %116 = vmatprep.subr.mxu0 0.0
  %117 = vmatpush1.msra.mxu0 0.0
  %118 = vmatprep.subr.mxu0 0.0
  %119 = vmatpush1.msra.mxu0 0.0
  %120 = vmatprep.subr.mxu0 0.0
  %121 = vmatpush1.msra.mxu0 0.0
  %122 = vmatprep.subr.mxu0 0.0
  %123 = vmatpush1.msra.mxu0 0.0
  %124 = vmatprep.subr.mxu0 0.0
  %125 = vmatpush1.msra.mxu0 0.0
  %126 = vmatprep.subr.mxu0 0.0
  %127 = vmatpush1.msra.mxu0 0.0
  %128 = vmatprep.subr.mxu0 0.0
  %129 = vmatpush1.msra.mxu0 0.0
  %130 = vmatprep.subr.mxu0 0.0
  %131 = vmatpush1.msra.mxu0 0.0
  %132 = vmatprep.subr.mxu0 0.0
  %133 = vmatpush1.msra.mxu0 0.0
  %134 = vmatprep.subr.mxu0 0.0
  %135 = vmatpush1.msra.mxu0 0.0
  %136 = vmatprep.subr.mxu0 0.0
  %137 = vmatpush1.msra.mxu0 0.0
  %138 = vmatprep.subr.mxu0 0.0
  %139 = vmatpush1.msra.mxu0 0.0
  %140 = vmatprep.subr.mxu0 0.0
  %141 = vmatpush1.msra.mxu0 0.0
  %142 = vmatprep.subr.mxu0 0.0
  %143 = vmatpush1.msra.mxu0 0.0
  %144 = vmatprep.subr.mxu0 0.0
  %145 = vmatpush1.msra.mxu0 0.0
  %146 = vmatprep.subr.mxu0 0.0
  %147 = vmatpush1.msra.mxu0 0.0
  %148 = vmatprep.subr.mxu0 0.0
  %149 = vmatpush1.msra.mxu0 0.0
  %150 = vmatprep.subr.mxu0 0.0
  %151 = vmatpush1.msra.mxu0 0.0
  %152 = vmatprep.subr.mxu0 0.0
  %153 = vmatpush1.msra.mxu0 0.0
  %154 = vmatprep.subr.mxu0 0.0
  %155 = vmatpush1.msra.mxu0 0.0
  %156 = vmatprep.subr.mxu0 0.0
  %157 = vmatpush1.msra.mxu0 0.0
  %158 = vmatprep.mubr.f32.mxu0 0.0
  %159 = vmatmul.mubr.f32.gmra.mrb[0].mxu0 %v43
  %v160 = vpop.f32.mrb[0].mxu0
  %v161 = vadd.f32 %v39, %v160
  %v162 = vpop.f32.mrb[0].mxu0
  %163 = vmatprep.mubr.f32.mxu0 0.0
  %164 = vmatmul.mubr.f32.gmra.mrb[0].mxu0 %v46
  %v165 = vpop.f32.mrb[0].mxu0
  %v166 = vadd.f32 %v39, %v165
  %v167 = vpop.f32.mrb[0].mxu0
  %168 = vmatprep.mubr.f32.mxu0 0.0
  %169 = vmatmul.mubr.f32.gmra.mrb[0].mxu0 %v49
  %v170 = vpop.f32.mrb[0].mxu0
  %v171 = vadd.f32 %v39, %v170
  %v172 = vpop.f32.mrb[0].mxu0
  %173 = vmatprep.mubr.f32.mxu0 0.0
  %174 = vmatmul.mubr.f32.gmra.mrb[0].mxu0 %v52
  %v175 = vpop.f32.mrb[0].mxu0
  %v176 = vadd.f32 %v39, %v175
  %v177 = vpop.f32.mrb[0].mxu0
  %178 = vmatprep.mubr.f32.mxu0 0.0
  %179 = vmatmul.mubr.f32.gmra.mrb[0].mxu0 %v55
  %v180 = vpop.f32.mrb[0].mxu0
  %v181 = vadd.f32 %v39, %v180
  %v182 = vpop.f32.mrb[0].mxu0
  %183 = vmatprep.mubr.f32.mxu0 0.0
  %184 = vmatmul.mubr.f32.gmra.mrb[0].mxu0 %v58
  %v185 = vpop.f32.mrb[0].mxu0
  %v186 = vadd.f32 %v39, %v185
  %v187 = vpop.f32.mrb[0].mxu0
  %188 = vmatprep.mubr.f32.mxu0 0.0
  %189 = vmatmul.mubr.f32.gmra.mrb[0].mxu0 %v61
  %v190 = vpop.f32.mrb[0].mxu0
  %v191 = vadd.f32 %v39, %v190
  %v192 = vpop.f32.mrb[0].mxu0
  %193 = vmatprep.mubr.f32.mxu0 0.0
  %194 = vmatmul.mubr.f32.gmra.mrb[0].mxu0 %v64
  %v195 = vpop.f32.mrb[0].mxu0
  %v196 = vadd.f32 %v39, %v195
  %v197 = vpop.f32.mrb[0].mxu0
  %198 = vmatprep.mubr.f32.mxu0 0.0
  %199 = vmatmul.mubr.f32.gmra.mrb[0].mxu0 %v67
  %v200 = vpop.f32.mrb[0].mxu0
  %v201 = vadd.f32 %v39, %v200
  %v202 = vpop.f32.mrb[0].mxu0
  %203 = vmatprep.mubr.f32.mxu0 0.0
  %204 = vmatmul.mubr.f32.gmra.mrb[0].mxu0 %v70
  %v205 = vpop.f32.mrb[0].mxu0
  %v206 = vadd.f32 %v39, %v205
  %v207 = vpop.f32.mrb[0].mxu0
  %208 = vmatprep.mubr.f32.mxu0 0.0
  %209 = vmatmul.mubr.f32.gmra.mrb[0].mxu0 %v73
  %v210 = vpop.f32.mrb[0].mxu0
  %v211 = vadd.f32 %v39, %v210
  %v212 = vpop.f32.mrb[0].mxu0
  %213 = vmatprep.mubr.f32.mxu0 0.0
  %214 = vmatmul.mubr.f32.gmra.mrb[0].mxu0 %v76
  %v215 = vpop.f32.mrb[0].mxu0
  %v216 = vadd.f32 %v39, %v215
  %v217 = vpop.f32.mrb[0].mxu0
  %218 = vmatprep.mubr.f32.mxu0 0.0
  %219 = vmatmul.mubr.f32.gmra.mrb[0].mxu0 %v79
  %v220 = vpop.f32.mrb[0].mxu0
  %v221 = vadd.f32 %v39, %v220
  %v222 = vpop.f32.mrb[0].mxu0
  %223 = vmatprep.mubr.f32.mxu0 0.0
  %224 = vmatmul.mubr.f32.gmra.mrb[0].mxu0 %v82
  %v225 = vpop.f32.mrb[0].mxu0
  %v226 = vadd.f32 %v39, %v225
  %v227 = vpop.f32.mrb[0].mxu0
  %228 = vmatprep.mubr.f32.mxu0 0.0
  %229 = vmatmul.mubr.f32.gmra.mrb[0].mxu0 %v85
  %v230 = vpop.f32.mrb[0].mxu0
  %v231 = vadd.f32 %v39, %v230
  %v232 = vpop.f32.mrb[0].mxu0
  %233 = vmatprep.mubr.f32.mxu0 0.0
  %234 = vmatmul.mubr.f32.gmra.mrb[0].mxu0 %v88
  %v235 = vpop.f32.mrb[0].mxu0
  %v236 = vadd.f32 %v39, %v235
  %v237 = vpop.f32.mrb[0].mxu0
  %238 = vdwg.mxu0
  %v239 = vxor.u32 %v161, 2147483648
  %v240 = vxor.u32 %v166, 2147483648
  %v241 = vxor.u32 %v171, 2147483648
  %v242 = vxor.u32 %v176, 2147483648
  %v243 = vxor.u32 %v181, 2147483648
  %v244 = vxor.u32 %v186, 2147483648
  %v245 = vxor.u32 %v191, 2147483648
  %v246 = vxor.u32 %v196, 2147483648
  %v247 = vxor.u32 %v201, 2147483648
  %v248 = vxor.u32 %v206, 2147483648
  %v249 = vxor.u32 %v211, 2147483648
  %v250 = vxor.u32 %v216, 2147483648
  %v251 = vxor.u32 %v221, 2147483648
  %v252 = vxor.u32 %v226, 2147483648
  %v253 = vxor.u32 %v231, 2147483648
  %v254 = vxor.u32 %v236, 2147483648
  %v255 = vmul.f32 %v239, 1.442695
  %v256 = vpow.pop %v255
  %v257 = vmul.f32 %v240, 1.442695
  %v258 = vpow.pop %v257
  %v259 = vmul.f32 %v241, 1.442695
  %v260 = vpow.pop %v259
  %v261 = vmul.f32 %v242, 1.442695
  %v262 = vpow.pop %v261
  %v263 = vmul.f32 %v243, 1.442695
  %v264 = vpow.pop %v263
  %v265 = vmul.f32 %v244, 1.442695
  %v266 = vpow.pop %v265
  %v267 = vmul.f32 %v245, 1.442695
  %v268 = vpow.pop %v267
  %v269 = vmul.f32 %v246, 1.442695
  %v270 = vpow.pop %v269
  %v271 = vmul.f32 %v247, 1.442695
  %v272 = vpow.pop %v271
  %v273 = vmul.f32 %v248, 1.442695
  %v274 = vpow.pop %v273
  %v275 = vmul.f32 %v249, 1.442695
  %v276 = vpow.pop %v275
  %v277 = vmul.f32 %v250, 1.442695
  %v278 = vpow.pop %v277
  %v279 = vmul.f32 %v251, 1.442695
  %v280 = vpow.pop %v279
  %v281 = vmul.f32 %v252, 1.442695
  %v282 = vpow.pop %v281
  %v283 = vmul.f32 %v253, 1.442695
  %v284 = vpow.pop %v283
  %v285 = vmul.f32 %v254, 1.442695
  %v286 = vpow.pop %v285
  %v287 = vadd.f32 %v256, 1.0
  %v288 = vadd.f32 %v258, 1.0
  %v289 = vadd.f32 %v260, 1.0
  %v290 = vadd.f32 %v262, 1.0
  %v291 = vadd.f32 %v264, 1.0
  %v292 = vadd.f32 %v266, 1.0
  %v293 = vadd.f32 %v268, 1.0
  %v294 = vadd.f32 %v270, 1.0
  %v295 = vadd.f32 %v272, 1.0
  %v296 = vadd.f32 %v274, 1.0
  %v297 = vadd.f32 %v276, 1.0
  %v298 = vadd.f32 %v278, 1.0
  %v299 = vadd.f32 %v280, 1.0
  %v300 = vadd.f32 %v282, 1.0
  %v301 = vadd.f32 %v284, 1.0
  %v302 = vadd.f32 %v286, 1.0
  %v303 = vrcp.pop %v287
  %v304 = vmul.f32 1.0, %v303
  %v305 = vrcp.pop %v288
  %v306 = vmul.f32 1.0, %v305
  %v307 = vrcp.pop %v289
  %v308 = vmul.f32 1.0, %v307
  %v309 = vrcp.pop %v290
  %v310 = vmul.f32 1.0, %v309
  %v311 = vrcp.pop %v291
  %v312 = vmul.f32 1.0, %v311
  %v313 = vrcp.pop %v292
  %v314 = vmul.f32 1.0, %v313
  %v315 = vrcp.pop %v293
  %v316 = vmul.f32 1.0, %v315
  %v317 = vrcp.pop %v294
  %v318 = vmul.f32 1.0, %v317
  %v319 = vrcp.pop %v295
  %v320 = vmul.f32 1.0, %v319
  %v321 = vrcp.pop %v296
  %v322 = vmul.f32 1.0, %v321
  %v323 = vrcp.pop %v297
  %v324 = vmul.f32 1.0, %v323
  %v325 = vrcp.pop %v298
  %v326 = vmul.f32 1.0, %v325
  %v327 = vrcp.pop %v299
  %v328 = vmul.f32 1.0, %v327
  %v329 = vrcp.pop %v300
  %v330 = vmul.f32 1.0, %v329
  %v331 = vrcp.pop %v301
  %v332 = vmul.f32 1.0, %v331
  %v333 = vrcp.pop %v302
  %v334 = vmul.f32 1.0, %v333
  %v335 = vmul.f32 %v161, %v304
  %v336 = vmul.f32 %v166, %v306
  %v337 = vmul.f32 %v171, %v308
  %v338 = vmul.f32 %v176, %v310
  %v339 = vmul.f32 %v181, %v312
  %v340 = vmul.f32 %v186, %v314
  %v341 = vmul.f32 %v191, %v316
  %v342 = vmul.f32 %v196, %v318
  %v343 = vmul.f32 %v201, %v320
  %v344 = vmul.f32 %v206, %v322
  %v345 = vmul.f32 %v211, %v324
  %v346 = vmul.f32 %v216, %v326
  %v347 = vmul.f32 %v221, %v328
  %v348 = vmul.f32 %v226, %v330
  %v349 = vmul.f32 %v231, %v332
  %v350 = vmul.f32 %v236, %v334
  %vm351 = vcmask 130048
  %352 = vst.msk [vmem:[%s3] sm:$0xff] %vm351, %v335
  %353 = vst.msk [vmem:[%s3 + $0x8] sm:$0xff] %vm351, %v336
  %354 = vst.msk [vmem:[%s3 + $0x10] sm:$0xff] %vm351, %v337
  %355 = vst.msk [vmem:[%s3 + $0x18] sm:$0xff] %vm351, %v338
  %356 = vst.msk [vmem:[%s3 + $0x20] sm:$0xff] %vm351, %v339
  %357 = vst.msk [vmem:[%s3 + $0x28] sm:$0xff] %vm351, %v340
  %358 = vst.msk [vmem:[%s3 + $0x30] sm:$0xff] %vm351, %v341
  %359 = vst.msk [vmem:[%s3 + $0x38] sm:$0xff] %vm351, %v342
  %360 = vst.msk [vmem:[%s3 + $0x40] sm:$0xff] %vm351, %v343
  %361 = vst.msk [vmem:[%s3 + $0x48] sm:$0xff] %vm351, %v344
  %362 = vst.msk [vmem:[%s3 + $0x50] sm:$0xff] %vm351, %v345
  %363 = vst.msk [vmem:[%s3 + $0x58] sm:$0xff] %vm351, %v346
  %364 = vst.msk [vmem:[%s3 + $0x60] sm:$0xff] %vm351, %v347
  %365 = vst.msk [vmem:[%s3 + $0x68] sm:$0xff] %vm351, %v348
  %366 = vst.msk [vmem:[%s3 + $0x70] sm:$0xff] %vm351, %v349
  %367 = vst.msk [vmem:[%s3 + $0x78] sm:$0xff] %vm351, %v350
  // Predicated region
  $region14: #{image_encoder_forward.3} parent=0 // pred_check
    _
  $region15: #{image_encoder_forward.3} parent=0 // pred_check_branch
    %369 = sbr.rel (0) target = $region17
  $region16: #{image_encoder_forward.3} parent=0 // pred_region
    _
  $region17: #{image_encoder_forward.3} parent=0 // pred_fallthru
    _
  // Predicated region
  $region18: #{image_encoder_forward.3} parent=0 // pred_check
    _
  $region19: #{image_encoder_forward.3} parent=0 // pred_check_branch
    %371 = sbr.rel (0) target = $region21
  $region20: #{image_encoder_forward.3} parent=0 // pred_region
    _
  $region21: #{image_encoder_forward.3} parent=0 // pred_fallthru
    _

// kernel: image_encoder_forward.4
$region0: #{image_encoder_forward.4}
  #allocation0 [shape = 'u32[]', space=smem, size = 0x4, offset = 0x4, fixed_abs, tag = 'smem constant byte address 0x4 - core index']
  #allocation1 [shape = 'u32[144,128]{1,0:T(1,128)}', space=vmem, size = 0x12000, scoped, tag = 'internal scratch']
  %s0 = inlined_call_operand.vmem [shape: f32[32,144], index: 0, kind: input, shape index: {}]
  %s1 = inlined_call_operand.vmem [shape: f32[144,32], index: 1, kind: input, shape index: {}]
  %s2 = inlined_call_operand.vmem [shape: f32[1,32], index: 2, kind: input, shape index: {}]
  %s3 = inlined_call_operand.vmem [shape: f32[32,32], index: 3, kind: output, shape index: {}]
  %s4 = sld [smem:[#allocation0]]
  $region22: #{image_encoder_forward.4} parent=0
    _
  %s6 = ssub.s32 1, %s4
  %s7 = scalar_select 0, %s6, %s4
  // Predicated region
  $region2: #{image_encoder_forward.4} parent=0 // pred_check
    _
  $region3: #{image_encoder_forward.4} parent=0 // pred_check_branch
    %9 = sbr.rel (0) target = $region5
  $region4: #{image_encoder_forward.4} parent=0 // pred_region
    _
  $region5: #{image_encoder_forward.4} parent=0 // pred_fallthru
    _
  // Predicated region
  $region6: #{image_encoder_forward.4} parent=0 // pred_check
    _
  $region7: #{image_encoder_forward.4} parent=0 // pred_check_branch
    %11 = sbr.rel (0) target = $region9
  $region8: #{image_encoder_forward.4} parent=0 // pred_region
    _
  $region9: #{image_encoder_forward.4} parent=0 // pred_fallthru
    _
  // Predicated region
  $region10: #{image_encoder_forward.4} parent=0 // pred_check
    _
  $region11: #{image_encoder_forward.4} parent=0 // pred_check_branch
    %13 = sbr.rel (0) target = $region13
  $region12: #{image_encoder_forward.4} parent=0 // pred_region
    _
  $region13: #{image_encoder_forward.4} parent=0 // pred_fallthru
    _
  %v14 = vld [vmem:[%s0] sm:$0xff]
  %v15 = vld [vmem:[%s0 + $0x8] sm:$0xff]
  %v16 = vld [vmem:[%s0 + $0x10] sm:$0xff]
  %v17 = vld [vmem:[%s0 + $0x18] sm:$0xff]
  %v18 = vld [vmem:[%s0 + $0x20] sm:$0xff]
  %v19 = vld [vmem:[%s0 + $0x28] sm:$0xff]
  %v20 = vld [vmem:[%s0 + $0x30] sm:$0xff]
  %v21 = vld [vmem:[%s0 + $0x38] sm:$0xff]
  %v22 = vld [vmem:[%s1] sm:$0xff]
  %v23 = vld [vmem:[%s1 + $0x8] sm:$0xff]
  %v24 = vld [vmem:[%s1 + $0x10] sm:$0xff]
  %v25 = vld [vmem:[%s1 + $0x18] sm:$0xff]
  %v26 = vld [vmem:[%s1 + $0x20] sm:$0xff]
  %v27 = vld [vmem:[%s1 + $0x28] sm:$0xff]
  %v28 = vld [vmem:[%s1 + $0x30] sm:$0xff]
  %v29 = vld [vmem:[%s1 + $0x38] sm:$0xff]
  %v30 = vld [vmem:[%s1 + $0x40] sm:$0xff]
  %v31 = vld [vmem:[%s1 + $0x48] sm:$0xff]
  %v32 = vld [vmem:[%s1 + $0x50] sm:$0xff]
  %v33 = vld [vmem:[%s1 + $0x58] sm:$0xff]
  %v34 = vld [vmem:[%s1 + $0x60] sm:$0xff]
  %v35 = vld [vmem:[%s1 + $0x68] sm:$0xff]
  %v36 = vld [vmem:[%s1 + $0x70] sm:$0xff]
  %v37 = vld [vmem:[%s1 + $0x78] sm:$0xff]
  %v38 = vld [vmem:[%s1 + $0x80] sm:$0xff]
  %v39 = vld [vmem:[%s1 + $0x88] sm:$0xff]
  %v40 = vld [vmem:[%s2] sm:$0x1]
  %v42 = vlaneseq
  %v43 = vshrl.u32 %v42, 7
  %v44 = vsub.s32 0, %v43
  %v45 = vrot.slane %v40, %v44
  %vm47 = vcmask 130048
  %v49 = vsel %vm47, %v15, 0
  %v52 = vsel %vm47, %v17, 0
  %v55 = vsel %vm47, %v19, 0
  %v58 = vsel %vm47, %v21, 0
  %60 = vmatprep.subr.mxu0 0.0
  %61 = vmatpush1.msra.mxu0 %v22
  %62 = vmatprep.subr.mxu0 0.0
  %63 = vmatpush1.msra.mxu0 %v23
  %64 = vmatprep.subr.mxu0 0.0
  %65 = vmatpush1.msra.mxu0 %v24
  %66 = vmatprep.subr.mxu0 0.0
  %67 = vmatpush1.msra.mxu0 %v25
  %68 = vmatprep.subr.mxu0 0.0
  %69 = vmatpush1.msra.mxu0 %v26
  %70 = vmatprep.subr.mxu0 0.0
  %71 = vmatpush1.msra.mxu0 %v27
  %72 = vmatprep.subr.mxu0 0.0
  %73 = vmatpush1.msra.mxu0 %v28
  %74 = vmatprep.subr.mxu0 0.0
  %75 = vmatpush1.msra.mxu0 %v29
  %76 = vmatprep.subr.mxu0 0.0
  %77 = vmatpush1.msra.mxu0 %v30
  %78 = vmatprep.subr.mxu0 0.0
  %79 = vmatpush1.msra.mxu0 %v31
  %80 = vmatprep.subr.mxu0 0.0
  %81 = vmatpush1.msra.mxu0 %v32
  %82 = vmatprep.subr.mxu0 0.0
  %83 = vmatpush1.msra.mxu0 %v33
  %84 = vmatprep.subr.mxu0 0.0
  %85 = vmatpush1.msra.mxu0 %v34
  %86 = vmatprep.subr.mxu0 0.0
  %87 = vmatpush1.msra.mxu0 %v35
  %88 = vmatprep.subr.mxu0 0.0
  %89 = vmatpush1.msra.mxu0 %v36
  %90 = vmatprep.subr.mxu0 0.0
  %91 = vmatpush1.msra.mxu0 %v37
  %92 = vmatprep.subr.mxu0 0.0
  %93 = vmatpush1.msra.mxu0 %v38
  %94 = vmatprep.subr.mxu0 0.0
  %95 = vmatpush1.msra.mxu0 %v39
  %96 = vmatprep.subr.mxu0 0.0
  %97 = vmatpush1.msra.mxu0 0.0
  %98 = vmatprep.subr.mxu0 0.0
  %99 = vmatpush1.msra.mxu0 0.0
  %100 = vmatprep.subr.mxu0 0.0
  %101 = vmatpush1.msra.mxu0 0.0
  %102 = vmatprep.subr.mxu0 0.0
  %103 = vmatpush1.msra.mxu0 0.0
  %104 = vmatprep.subr.mxu0 0.0
  %105 = vmatpush1.msra.mxu0 0.0
  %106 = vmatprep.subr.mxu0 0.0
  %107 = vmatpush1.msra.mxu0 0.0
  %108 = vmatprep.subr.mxu0 0.0
  %109 = vmatpush1.msra.mxu0 0.0
  %110 = vmatprep.subr.mxu0 0.0
  %111 = vmatpush1.msra.mxu0 0.0
  %112 = vmatprep.subr.mxu0 0.0
  %113 = vmatpush1.msra.mxu0 0.0
  %114 = vmatprep.subr.mxu0 0.0
  %115 = vmatpush1.msra.mxu0 0.0
  %116 = vmatprep.subr.mxu0 0.0
  %117 = vmatpush1.msra.mxu0 0.0
  %118 = vmatprep.subr.mxu0 0.0
  %119 = vmatpush1.msra.mxu0 0.0
  %120 = vmatprep.subr.mxu0 0.0
  %121 = vmatpush1.msra.mxu0 0.0
  %122 = vmatprep.subr.mxu0 0.0
  %123 = vmatpush1.msra.mxu0 0.0
  %124 = vmatprep.mubr.f32.mxu0 %v49
  %125 = vmatmul.mubr.f32.gmra.mrb[0].mxu0 %v14
  %v126 = vpop.f32.mrb[0].mxu0
  %v127 = vadd.f32 %v45, %v126
  %v128 = vpop.f32.mrb[0].mxu0
  %129 = vmatprep.mubr.f32.mxu0 %v52
  %130 = vmatmul.mubr.f32.gmra.mrb[0].mxu0 %v16
  %v131 = vpop.f32.mrb[0].mxu0
  %v132 = vadd.f32 %v45, %v131
  %v133 = vpop.f32.mrb[0].mxu0
  %134 = vmatprep.mubr.f32.mxu0 %v55
  %135 = vmatmul.mubr.f32.gmra.mrb[0].mxu0 %v18
  %v136 = vpop.f32.mrb[0].mxu0
  %v137 = vadd.f32 %v45, %v136
  %v138 = vpop.f32.mrb[0].mxu0
  %139 = vmatprep.mubr.f32.mxu0 %v58
  %140 = vmatmul.mubr.f32.gmra.mrb[0].mxu0 %v20
  %v141 = vpop.f32.mrb[0].mxu0
  %v142 = vadd.f32 %v45, %v141
  %v143 = vpop.f32.mrb[0].mxu0
  %144 = vdwg.mxu0
  %v145 = vxor.u32 %v127, 2147483648
  %v146 = vxor.u32 %v132, 2147483648
  %v147 = vxor.u32 %v137, 2147483648
  %v148 = vxor.u32 %v142, 2147483648
  %v149 = vmul.f32 %v145, 1.442695
  %v150 = vpow.pop %v149
  %v151 = vmul.f32 %v146, 1.442695
  %v152 = vpow.pop %v151
  %v153 = vmul.f32 %v147, 1.442695
  %v154 = vpow.pop %v153
  %v155 = vmul.f32 %v148, 1.442695
  %v156 = vpow.pop %v155
  %v157 = vadd.f32 %v150, 1.0
  %v158 = vadd.f32 %v152, 1.0
  %v159 = vadd.f32 %v154, 1.0
  %v160 = vadd.f32 %v156, 1.0
  %v161 = vrcp.pop %v157
  %v162 = vmul.f32 1.0, %v161
  %v163 = vrcp.pop %v158
  %v164 = vmul.f32 1.0, %v163
  %v165 = vrcp.pop %v159
  %v166 = vmul.f32 1.0, %v165
  %v167 = vrcp.pop %v160
  %v168 = vmul.f32 1.0, %v167
  %v169 = vmul.f32 %v127, %v162
  %v170 = vmul.f32 %v132, %v164
  %v171 = vmul.f32 %v137, %v166
  %v172 = vmul.f32 %v142, %v168
  %vm173 = vcmask 261120
  %174 = vst.msk [vmem:[%s3] sm:$0xff] %vm173, %v169
  %175 = vst.msk [vmem:[%s3 + $0x8] sm:$0xff] %vm173, %v170
  %176 = vst.msk [vmem:[%s3 + $0x10] sm:$0xff] %vm173, %v171
  %177 = vst.msk [vmem:[%s3 + $0x18] sm:$0xff] %vm173, %v172
  // Predicated region
  $region14: #{image_encoder_forward.4} parent=0 // pred_check
    _
  $region15: #{image_encoder_forward.4} parent=0 // pred_check_branch
    %179 = sbr.rel (0) target = $region17
  $region16: #{image_encoder_forward.4} parent=0 // pred_region
    _
  $region17: #{image_encoder_forward.4} parent=0 // pred_fallthru
    _
  // Predicated region
  $region18: #{image_encoder_forward.4} parent=0 // pred_check
    _
  $region19: #{image_encoder_forward.4} parent=0 // pred_check_branch
    %181 = sbr.rel (0) target = $region21
  $region20: #{image_encoder_forward.4} parent=0 // pred_region
    _
  $region21: #{image_encoder_forward.4} parent=0 // pred_fallthru
    _

// kernel: image_encoder_forward.5
$region0: #{image_encoder_forward.5}
  #allocation0 [shape = 'u32[]', space=smem, size = 0x4, offset = 0x4, fixed_abs, tag = 'smem constant byte address 0x4 - core index']
  #allocation1 [shape = 'u32[144,128]{1,0:T(1,128)}', space=vmem, size = 0x12000, scoped, tag = 'internal scratch']
  #allocation2 [shape = 'f32[1,64]{1,0:T(1,128)}', space=vmem, size = 0x200, scoped, tag = 'scratch operand']
  %s0 = inlined_call_operand.vmem [shape: f32[2,8,288], index: 0, kind: input, shape index: {}]
  %s1 = inlined_call_operand.vmem [shape: f32[288,64], index: 1, kind: input, shape index: {}]
  %s2 = inlined_call_operand.vmem [shape: f32[1,64], index: 2, kind: input, shape index: {}]
  %s3 = inlined_call_operand.vmem [shape: f32[1,64], index: 3, kind: input, shape index: {}]
  %s4 = inlined_call_operand.vmem [shape: f32[1,64], index: 4, kind: input, shape index: {}]
  %s5 = inlined_call_operand.hbm [shape: f32[2,1,64], index: 5, kind: output, shape index: {}]
  %s6 = sld [smem:[#allocation0]]
  $region61: #{image_encoder_forward.5} parent=0
    _
  %s8 = ssub.s32 1, %s6
  %s9 = scalar_select 0, %s8, %s6
  $region1: #{image_encoder_forward.5} parent=0
    #allocation3 [shape = 'u8[1024]{0}', space=vmem, size = 0x400, scoped, tag = 'output window, operand 0']
    #allocation4 [shape = 's32[2]{0}', space=sflag, size = 0x8, scoped, tag = 'scoped memory for image_encoder_forward.5']
    %10 = vsyncpa [#allocation4], 0
    %s11 = scalar_lea.sflag [#allocation4], 1
    %12 = vsyncpa %s11, 0
    loop: start=0, step=1, limit=4
    $region2: #{image_encoder_forward.5} parent=1 // loop_pre_header
      _
    $region3: #{image_encoder_forward.5} parent=1 // loop_header
      %s14 = sphi 0, %s18
      %p15 = scmp.ge.s32.totalorder %s14, 4
      %s21 = sphi 0, %s33
      %s22 = sphi 0, %s29
      %s23 = sphi 0, %s21
      %s24 = sphi 0, %s22
      %s25 = sphi 0, %s23
      %s26 = sphi 0, %s24
      %s38 = sphi 0, %s40
      %s41 = sphi 0, %s38
      %s42 = sphi 0, %s41
      %s58 = sphi 0, %s42
      %s62 = sphi 0, %s62
      %s64 = sphi 0, %s62
      %s65 = sphi 0, %s64
      %s79 = sphi 0, %s65
      %s83 = sphi 0, %s83
      %s85 = sphi 0, %s83
      %s86 = sphi 0, %s85
      %s100 = sphi 0, %s86
      %s104 = sphi 0, %s104
      %s106 = sphi 0, %s104
      %s107 = sphi 0, %s106
      %s121 = sphi 0, %s107
      %s125 = sphi 0, %s125
      %s127 = sphi 0, %s125
      %s128 = sphi 0, %s127
      %s142 = sphi 0, %s128
      %s148 = sphi 0, %s150
      %s151 = sphi 0, %s148
      %s152 = sphi 0, %s151
      %s168 = sphi 0, %s152
    $region4: #{image_encoder_forward.5} parent=1 // loop_header_branch
      %17 = sbr.rel (%p15) target = $region8
    $region5: #{image_encoder_forward.5} parent=1 // loop_body
      %s19 = ssub.s32 %s14, 1
      %s20 = ssub.s32 %s14, 2
      %s27 = sadd.s32 1, %s22
      %p28 = scmp.ge.s32.totalorder %s27, 1
      %s29 = scalar_select %p28, 0, %s27
      %s30 = sadd.s32 1, %s21
      %s31 = scalar_select %p28, %s30, %s21
      %p32 = scmp.ge.s32.totalorder %s31, 2
      %s33 = scalar_select %p32, 0, %s31
      %s34 = ssub.s32 %s21, %s33
      %s35 = ssub.s32 %s22, %s29
      %s36 = sor.u32 %s34, %s35
      %p37 = scmp.eq.s32.totalorder %s36, 0
      %s39 = sadd.s32 %s38, 1
      %s40 = scalar_select %p37, %s38, %s39
      %p43 = pneg %p37
      %p44 = scmp.eq.s32.totalorder %s14, 1
      %p45 = por %p43, %p44
      %p46 = scmp.ne.s32.totalorder %s38, %s41
      %p47 = scmp.eq.s32.totalorder %s14, 0
      %p48 = por %p46, %p47
      %p49 = scmp.ne.s32.totalorder %s38, %s41
      %p50 = scmp.eq.s32.totalorder %s19, 1
      %p51 = por %p49, %p50
      %p52 = scmp.ne.s32.totalorder %s41, %s42
      %p53 = scmp.eq.s32.totalorder %s19, 0
      %p54 = por %p52, %p53
      %p55 = scmp.ne.s32.totalorder %s41, %s42
      %p56 = scmp.eq.s32.totalorder %s20, 1
      %p57 = por %p55, %p56
      %p59 = scmp.ne.s32.totalorder %s42, %s58
      %p60 = scmp.eq.s32.totalorder %s20, 0
      %p61 = por %p59, %p60
      %s63 = sadd.s32 %s62, 1
      %p66 = scmp.eq.s32.totalorder %s14, 1
      %p67 = scmp.ne.s32.totalorder %s62, %s64
      %p68 = scmp.eq.s32.totalorder %s14, 0
      %p69 = por %p67, %p68
      %p70 = scmp.ne.s32.totalorder %s62, %s64
      %p71 = scmp.eq.s32.totalorder %s19, 1
      %p72 = por %p70, %p71
      %p73 = scmp.ne.s32.totalorder %s64, %s65
      %p74 = scmp.eq.s32.totalorder %s19, 0
      %p75 = por %p73, %p74
      %p76 = scmp.ne.s32.totalorder %s64, %s65
      %p77 = scmp.eq.s32.totalorder %s20, 1
      %p78 = por %p76, %p77
      %p80 = scmp.ne.s32.totalorder %s65, %s79
      %p81 = scmp.eq.s32.totalorder %s20, 0
      %p82 = por %p80, %p81
      %s84 = sadd.s32 %s83, 1
      %p87 = scmp.eq.s32.totalorder %s14, 1
      %p88 = scmp.ne.s32.totalorder %s83, %s85
      %p89 = scmp.eq.s32.totalorder %s14, 0
      %p90 = por %p88, %p89
      %p91 = scmp.ne.s32.totalorder %s83, %s85
      %p92 = scmp.eq.s32.totalorder %s19, 1
      %p93 = por %p91, %p92
      %p94 = scmp.ne.s32.totalorder %s85, %s86
      %p95 = scmp.eq.s32.totalorder %s19, 0
      %p96 = por %p94, %p95
      %p97 = scmp.ne.s32.totalorder %s85, %s86
      %p98 = scmp.eq.s32.totalorder %s20, 1
      %p99 = por %p97, %p98
      %p101 = scmp.ne.s32.totalorder %s86, %s100
      %p102 = scmp.eq.s32.totalorder %s20, 0
      %p103 = por %p101, %p102
      %s105 = sadd.s32 %s104, 1
      %p108 = scmp.eq.s32.totalorder %s14, 1
      %p109 = scmp.ne.s32.totalorder %s104, %s106
      %p110 = scmp.eq.s32.totalorder %s14, 0
      %p111 = por %p109, %p110
      %p112 = scmp.ne.s32.totalorder %s104, %s106
      %p113 = scmp.eq.s32.totalorder %s19, 1
      %p114 = por %p112, %p113
      %p115 = scmp.ne.s32.totalorder %s106, %s107
      %p116 = scmp.eq.s32.totalorder %s19, 0
      %p117 = por %p115, %p116
      %p118 = scmp.ne.s32.totalorder %s106, %s107
      %p119 = scmp.eq.s32.totalorder %s20, 1
      %p120 = por %p118, %p119
      %p122 = scmp.ne.s32.totalorder %s107, %s121
      %p123 = scmp.eq.s32.totalorder %s20, 0
      %p124 = por %p122, %p123
      %s126 = sadd.s32 %s125, 1
      %p129 = scmp.eq.s32.totalorder %s14, 1
      %p130 = scmp.ne.s32.totalorder %s125, %s127
      %p131 = scmp.eq.s32.totalorder %s14, 0
      %p132 = por %p130, %p131
      %p133 = scmp.ne.s32.totalorder %s125, %s127
      %p134 = scmp.eq.s32.totalorder %s19, 1
      %p135 = por %p133, %p134
      %p136 = scmp.ne.s32.totalorder %s127, %s128
      %p137 = scmp.eq.s32.totalorder %s19, 0
      %p138 = por %p136, %p137
      %p139 = scmp.ne.s32.totalorder %s127, %s128
      %p140 = scmp.eq.s32.totalorder %s20, 1
      %p141 = por %p139, %p140
      %p143 = scmp.ne.s32.totalorder %s128, %s142
      %p144 = scmp.eq.s32.totalorder %s20, 0
      %p145 = por %p143, %p144
      %s146 = ssub.s32 %s21, %s33
      %p147 = scmp.eq.s32.totalorder %s146, 0
      %s149 = sadd.s32 %s148, 1
      %s150 = scalar_select %p147, %s148, %s149
      %p153 = pneg %p147
      %p154 = scmp.eq.s32.totalorder %s14, 1
      %p155 = por %p153, %p154
      %p156 = scmp.ne.s32.totalorder %s148, %s151
      %p157 = scmp.eq.s32.totalorder %s14, 0
      %p158 = por %p156, %p157
      %p159 = scmp.ne.s32.totalorder %s148, %s151
      %p160 = scmp.eq.s32.totalorder %s19, 1
      %p161 = por %p159, %p160
      %p162 = scmp.ne.s32.totalorder %s151, %s152
      %p163 = scmp.eq.s32.totalorder %s19, 0
      %p164 = por %p162, %p163
      %p165 = scmp.ne.s32.totalorder %s151, %s152
      %p166 = scmp.eq.s32.totalorder %s20, 1
      %p167 = por %p165, %p166
      %p169 = scmp.ne.s32.totalorder %s152, %s168
      %p170 = scmp.eq.s32.totalorder %s20, 0
      %p171 = por %p169, %p170
      %p172 = scmp.le.s32.totalorder 1, %s14
      %p173 = scmp.lt.s32.totalorder %s14, 3
      %p174 = pnand %p172, %p173
      %p175 = pneg %p174
      // Predicated region
      $region9: #{image_encoder_forward.5} parent=5 // pred_check
        _
      $region10: #{image_encoder_forward.5} parent=5 // pred_check_branch
        %177 = sbr.rel (%p174) target = $region12
      $region11: #{image_encoder_forward.5} parent=5 // pred_region
        %s178 = ssub.s32 %s14, 1
        // Predicated region
        $region13: #{image_encoder_forward.5} parent=11 // pred_check
          %p179 = pneg %p75
        $region14: #{image_encoder_forward.5} parent=11 // pred_check_branch
          %181 = sbr.rel (%p179) target = $region16
        $region15: #{image_encoder_forward.5} parent=11 // pred_region
          _
        $region16: #{image_encoder_forward.5} parent=11 // pred_fallthru
          _
        // Predicated region
        $region17: #{image_encoder_forward.5} parent=11 // pred_check
          %p182 = pneg %p96
        $region18: #{image_encoder_forward.5} parent=11 // pred_check_branch
          %184 = sbr.rel (%p182) target = $region20
        $region19: #{image_encoder_forward.5} parent=11 // pred_region
          _
        $region20: #{image_encoder_forward.5} parent=11 // pred_fallthru
          _
        // Predicated region
        $region21: #{image_encoder_forward.5} parent=11 // pred_check
          %p185 = pneg %p117
        $region22: #{image_encoder_forward.5} parent=11 // pred_check_branch
          %187 = sbr.rel (%p185) target = $region24
        $region23: #{image_encoder_forward.5} parent=11 // pred_region
          _
        $region24: #{image_encoder_forward.5} parent=11 // pred_fallthru
          _
        // Predicated region
        $region25: #{image_encoder_forward.5} parent=11 // pred_check
          %p188 = pneg %p138
        $region26: #{image_encoder_forward.5} parent=11 // pred_check_branch
          %190 = sbr.rel (%p188) target = $region28
        $region27: #{image_encoder_forward.5} parent=11 // pred_region
          _
        $region28: #{image_encoder_forward.5} parent=11 // pred_fallthru
          _
      $region12: #{image_encoder_forward.5} parent=5 // pred_fallthru
        _
      %p191 = scmp.lt.s32.totalorder %s14, 2
      // Predicated region
      $region29: #{image_encoder_forward.5} parent=5 // pred_check
        %p192 = pneg %p191
      $region30: #{image_encoder_forward.5} parent=5 // pred_check_branch
        %194 = sbr.rel (%p192) target = $region32
      $region31: #{image_encoder_forward.5} parent=5 // pred_region
        // Predicated region
        $region33: #{image_encoder_forward.5} parent=31 // pred_check
          %p195 = pneg %p48
        $region34: #{image_encoder_forward.5} parent=31 // pred_check_branch
          %197 = sbr.rel (%p195) target = $region36
        $region35: #{image_encoder_forward.5} parent=31 // pred_region
          %p198 = scmp.lt.s32.totalorder %s21, 1
          %s199 = scalar_select %p198, %s21, 1
          %p200 = scmp.lt.s32.totalorder %s22, 0
          %s201 = scalar_select %p200, %s22, 0
          %s202 = smul.addr %s201, 3
          %s203 = smul.addr %s199, 3
          %s204 = sadd.s32 %s202, %s203
          %s205 = smul.addr %s204, 8
          %s206 = scalar_lea.vmem %s0, %s205
        $region36: #{image_encoder_forward.5} parent=31 // pred_fallthru
          _
      $region32: #{image_encoder_forward.5} parent=5 // pred_fallthru
        _
      %p207 = scmp.le.s32.totalorder 1, %s14
      %p208 = scmp.lt.s32.totalorder %s14, 3
      %p209 = pnand %p207, %p208
      %p210 = pneg %p209
      // Predicated region
      $region37: #{image_encoder_forward.5} parent=5 // pred_check
        _
      $region38: #{image_encoder_forward.5} parent=5 // pred_check_branch
        %212 = sbr.rel (%p209) target = $region40
      $region39: #{image_encoder_forward.5} parent=5 // pred_region
        %s213 = ssub.s32 %s14, 1
        %p214 = scmp.lt.s32.totalorder %s23, 1
        %s215 = scalar_select %p214, %s23, 1
        %p216 = scmp.lt.s32.totalorder %s24, 0
        %s217 = scalar_select %p216, %s24, 0
        %s218 = smul.addr %s217, 3
        %s219 = smul.addr %s215, 3
        %s220 = sadd.s32 %s218, %s219
        %s221 = smul.addr %s220, 8
        %s222 = scalar_lea.vmem %s0, %s221
        %p223 = pneg %p54
        %p224 = pneg %p51
        %p225 = pneg %p75
        %p226 = pneg %p72
        %p227 = pneg %p96
        %p228 = pneg %p93
        %p229 = pneg %p117
        %p230 = pneg %p114
        %p231 = pneg %p138
        %p232 = pneg %p135
        %p233 = pneg %p164
        %p234 = pneg %p161
        %s235 = sand.u32 %s151, 1
        %s236 = scalar_lea.sflag [#allocation4], %s235
        %s237 = sand.u32 %s151, 1
        %s238 = scalar_lea.vmem [#allocation3], %s237
        %p239 = scmp.lt.s32.totalorder %s23, 1
        %s240 = scalar_select %p239, %s23, 1
        %p241 = scmp.lt.s32.totalorder %s24, 0
        %s242 = scalar_select %p241, %s24, 0
        %s243 = smul.addr %s242, 3
        %s244 = smul.addr %s240, 3
        %s245 = sadd.s32 %s243, %s244
        %s246 = smul.addr %s245, 8
        %s247 = scalar_lea.vmem %s0, %s246
        %p248 = scmp.eq.s32.totalorder %s24, 0
        // Predicated region
        $region41: #{image_encoder_forward.5} parent=39 // pred_check
          %p249 = pneg %p248
        $region42: #{image_encoder_forward.5} parent=39 // pred_check_branch
          %251 = sbr.rel (%p249) target = $region44
        $region43: #{image_encoder_forward.5} parent=39 // pred_region
          %vm252 = vcmask 516096
          %253 = vst.msk [vmem:[#allocation2] sm:$0x1] %vm252, 0.0
        $region44: #{image_encoder_forward.5} parent=39 // pred_fallthru
          _
        %v254 = vld [vmem:[%s247] sm:$0xff]
        %v255 = vld [vmem:[%s247 + $0x8] sm:$0xff]
        %v256 = vld [vmem:[%s247 + $0x10] sm:$0xff]
        %v257 = vld [vmem:[%s1] sm:$0xff]
        %v258 = vld [vmem:[%s1 + $0x8] sm:$0xff]
        %v259 = vld [vmem:[%s1 + $0x10] sm:$0xff]
        %v260 = vld [vmem:[%s1 + $0x18] sm:$0xff]
        %v261 = vld [vmem:[%s1 + $0x20] sm:$0xff]
        %v262 = vld [vmem:[%s1 + $0x28] sm:$0xff]
        %v263 = vld [vmem:[%s1 + $0x30] sm:$0xff]
        %v264 = vld [vmem:[%s1 + $0x38] sm:$0xff]
        %v265 = vld [vmem:[%s1 + $0x40] sm:$0xff]
        %v266 = vld [vmem:[%s1 + $0x48] sm:$0xff]
        %v267 = vld [vmem:[%s1 + $0x50] sm:$0xff]
        %v268 = vld [vmem:[%s1 + $0x58] sm:$0xff]
        %v269 = vld [vmem:[%s1 + $0x60] sm:$0xff]
        %v270 = vld [vmem:[%s1 + $0x68] sm:$0xff]
        %v271 = vld [vmem:[%s1 + $0x70] sm:$0xff]
        %v272 = vld [vmem:[%s1 + $0x78] sm:$0xff]
        %v273 = vld [vmem:[%s1 + $0x80] sm:$0xff]
        %v274 = vld [vmem:[%s1 + $0x88] sm:$0xff]
        %v275 = vld [vmem:[%s1 + $0x90] sm:$0xff]
        %v276 = vld [vmem:[%s1 + $0x98] sm:$0xff]
        %v277 = vld [vmem:[%s1 + $0xa0] sm:$0xff]
        %v278 = vld [vmem:[%s1 + $0xa8] sm:$0xff]
        %v279 = vld [vmem:[%s1 + $0xb0] sm:$0xff]
        %v280 = vld [vmem:[%s1 + $0xb8] sm:$0xff]
        %v281 = vld [vmem:[%s1 + $0xc0] sm:$0xff]
        %v282 = vld [vmem:[%s1 + $0xc8] sm:$0xff]
        %v283 = vld [vmem:[%s1 + $0xd0] sm:$0xff]
        %v284 = vld [vmem:[%s1 + $0xd8] sm:$0xff]
        %v285 = vld [vmem:[%s1 + $0xe0] sm:$0xff]
        %v286 = vld [vmem:[%s1 + $0xe8] sm:$0xff]
        %v287 = vld [vmem:[%s1 + $0xf0] sm:$0xff]
        %v288 = vld [vmem:[%s1 + $0xf8] sm:$0xff]
        %v289 = vld [vmem:[%s1 + $0x100] sm:$0xff]
        %v290 = vld [vmem:[%s1 + $0x108] sm:$0xff]
        %v291 = vld [vmem:[%s1 + $0x110] sm:$0xff]
        %v292 = vld [vmem:[%s1 + $0x118] sm:$0xff]
        %v293 = vld [vmem:[%s2] sm:$0x1]
        %v295 = vlaneseq
        %v296 = vshrl.u32 %v295, 7
        %v297 = vsub.s32 0, %v296
        %v298 = vrot.slane %v293, %v297
        %vm300 = vcmask 261120
        %v302 = vsel %vm300, %v256, 0
        %304 = vmatprep.subr.mxu0 0.0
        %305 = vmatpush1.msra.mxu0 %v257
        %306 = vmatprep.subr.mxu0 0.0
        %307 = vmatpush1.msra.mxu0 %v258
        %308 = vmatprep.subr.mxu0 0.0
        %309 = vmatpush1.msra.mxu0 %v259
        %310 = vmatprep.subr.mxu0 0.0
        %311 = vmatpush1.msra.mxu0 %v260
        %312 = vmatprep.subr.mxu0 0.0
        %313 = vmatpush1.msra.mxu0 %v261
        %314 = vmatprep.subr.mxu0 0.0
        %315 = vmatpush1.msra.mxu0 %v262
        %316 = vmatprep.subr.mxu0 0.0
        %317 = vmatpush1.msra.mxu0 %v263
        %318 = vmatprep.subr.mxu0 0.0
        %319 = vmatpush1.msra.mxu0 %v264
        %320 = vmatprep.subr.mxu0 0.0
        %321 = vmatpush1.msra.mxu0 %v265
        %322 = vmatprep.subr.mxu0 0.0
        %323 = vmatpush1.msra.mxu0 %v266
        %324 = vmatprep.subr.mxu0 0.0
        %325 = vmatpush1.msra.mxu0 %v267
        %326 = vmatprep.subr.mxu0 0.0
        %327 = vmatpush1.msra.mxu0 %v268
        %328 = vmatprep.subr.mxu0 0.0
        %329 = vmatpush1.msra.mxu0 %v269
        %330 = vmatprep.subr.mxu0 0.0
        %331 = vmatpush1.msra.mxu0 %v270
        %332 = vmatprep.subr.mxu0 0.0
        %333 = vmatpush1.msra.mxu0 %v271
        %334 = vmatprep.subr.mxu0 0.0
        %335 = vmatpush1.msra.mxu0 %v272
        %336 = vmatprep.subr.mxu0 0.0
        %337 = vmatpush1.msra.mxu0 %v273
        %338 = vmatprep.subr.mxu0 0.0
        %339 = vmatpush1.msra.mxu0 %v274
        %340 = vmatprep.subr.mxu0 0.0
        %341 = vmatpush1.msra.mxu0 %v275
        %342 = vmatprep.subr.mxu0 0.0
        %343 = vmatpush1.msra.mxu0 %v276
        %344 = vmatprep.subr.mxu0 0.0
        %345 = vmatpush1.msra.mxu0 %v277
        %346 = vmatprep.subr.mxu0 0.0
        %347 = vmatpush1.msra.mxu0 %v278
        %348 = vmatprep.subr.mxu0 0.0
        %349 = vmatpush1.msra.mxu0 %v279
        %350 = vmatprep.subr.mxu0 0.0
        %351 = vmatpush1.msra.mxu0 %v280
        %352 = vmatprep.subr.mxu0 0.0
        %353 = vmatpush1.msra.mxu0 %v281
        %354 = vmatprep.subr.mxu0 0.0
        %355 = vmatpush1.msra.mxu0 %v282
        %356 = vmatprep.subr.mxu0 0.0
        %357 = vmatpush1.msra.mxu0 %v283
        %358 = vmatprep.subr.mxu0 0.0
        %359 = vmatpush1.msra.mxu0 %v284
        %360 = vmatprep.subr.mxu0 0.0
        %361 = vmatpush1.msra.mxu0 %v285
        %362 = vmatprep.subr.mxu0 0.0
        %363 = vmatpush1.msra.mxu0 %v286
        %364 = vmatprep.subr.mxu0 0.0
        %365 = vmatpush1.msra.mxu0 %v287
        %366 = vmatprep.subr.mxu0 0.0
        %367 = vmatpush1.msra.mxu0 %v288
        %368 = vmatprep.mubr.f32.mxu0 %v255
        %369 = vmatmul.mubr.f32.gmra.mrb[0].mxu0 %v254
        %v370 = vpop.f32.mrb[0].mxu0
        %v371 = vadd.f32 %v298, %v370
        %v372 = vpop.f32.mrb[0].mxu0
        %373 = vdwg.mxu0
        %374 = vmatprep.subr.mxu0 0.0
        %375 = vmatpush1.msra.mxu0 %v289
        %376 = vmatprep.subr.mxu0 0.0
        %377 = vmatpush1.msra.mxu0 %v290
        %378 = vmatprep.subr.mxu0 0.0
        %379 = vmatpush1.msra.mxu0 %v291
        %380 = vmatprep.subr.mxu0 0.0
        %381 = vmatpush1.msra.mxu0 %v292
        %382 = vmatprep.subr.mxu0 0.0
        %383 = vmatpush1.msra.mxu0 0.0
        %384 = vmatprep.subr.mxu0 0.0
        %385 = vmatpush1.msra.mxu0 0.0
        %386 = vmatprep.subr.mxu0 0.0
        %387 = vmatpush1.msra.mxu0 0.0
        %388 = vmatprep.subr.mxu0 0.0
        %389 = vmatpush1.msra.mxu0 0.0
        %390 = vmatprep.subr.mxu0 0.0
        %391 = vmatpush1.msra.mxu0 0.0
        %392 = vmatprep.subr.mxu0 0.0
        %393 = vmatpush1.msra.mxu0 0.0
        %394 = vmatprep.subr.mxu0 0.0
        %395 = vmatpush1.msra.mxu0 0.0
        %396 = vmatprep.subr.mxu0 0.0
        %397 = vmatpush1.msra.mxu0 0.0
        %398 = vmatprep.subr.mxu0 0.0
        %399 = vmatpush1.msra.mxu0 0.0
        %400 = vmatprep.subr.mxu0 0.0
        %401 = vmatpush1.msra.mxu0 0.0
        %402 = vmatprep.subr.mxu0 0.0
        %403 = vmatpush1.msra.mxu0 0.0
        %404 = vmatprep.subr.mxu0 0.0
        %405 = vmatpush1.msra.mxu0 0.0
        %406 = vmatprep.subr.mxu0 0.0
        %407 = vmatpush1.msra.mxu0 0.0
        %408 = vmatprep.subr.mxu0 0.0
        %409 = vmatpush1.msra.mxu0 0.0
        %410 = vmatprep.subr.mxu0 0.0
        %411 = vmatpush1.msra.mxu0 0.0
        %412 = vmatprep.subr.mxu0 0.0
        %413 = vmatpush1.msra.mxu0 0.0
        %414 = vmatprep.subr.mxu0 0.0
        %415 = vmatpush1.msra.mxu0 0.0
        %416 = vmatprep.subr.mxu0 0.0
        %417 = vmatpush1.msra.mxu0 0.0
        %418 = vmatprep.subr.mxu0 0.0
        %419 = vmatpush1.msra.mxu0 0.0
        %420 = vmatprep.subr.mxu0 0.0
        %421 = vmatpush1.msra.mxu0 0.0
        %422 = vmatprep.subr.mxu0 0.0
        %423 = vmatpush1.msra.mxu0 0.0
        %424 = vmatprep.subr.mxu0 0.0
        %425 = vmatpush1.msra.mxu0 0.0
        %426 = vmatprep.subr.mxu0 0.0
        %427 = vmatpush1.msra.mxu0 0.0
        %428 = vmatprep.subr.mxu0 0.0
        %429 = vmatpush1.msra.mxu0 0.0
        %430 = vmatprep.subr.mxu0 0.0
        %431 = vmatpush1.msra.mxu0 0.0
        %432 = vmatprep.subr.mxu0 0.0
        %433 = vmatpush1.msra.mxu0 0.0
        %434 = vmatprep.subr.mxu0 0.0
        %435 = vmatpush1.msra.mxu0 0.0
        %436 = vmatprep.subr.mxu0 0.0
        %437 = vmatpush1.msra.mxu0 0.0
        %438 = vmatprep.mubr.f32.mxu0 0.0
        %439 = vmatmul.mubr.f32.gmra.mrb[0].mxu0 %v302
        %v440 = vpop.f32.mrb[0].mxu0
        %v441 = vadd.f32 %v371, %v440
        %v442 = vpop.f32.mrb[0].mxu0
        %443 = vdwg.mxu0
        %v444 = vxor.u32 %v441, 2147483648
        %v445 = vmul.f32 %v444, 1.442695
        %v446 = vpow.pop %v445
        %v447 = vadd.f32 %v446, 1.0
        %v448 = vrcp.pop %v447
        %v449 = vmul.f32 1.0, %v448
        %v450 = vmul.f32 %v441, %v449
        %s451 = smul.u32 %s24, 8
        %v452 = vlaneseq
        %v453 = vshrl.u32 %v452, 7
        %v454 = vstv %s451
        %v455 = vadd.s32 %v454, %v453
        %vm456 = vcmp.lt.s32.totalorder %v455, 4
        %v457 = vsel %vm456, 1, 0
        %vm458 = vcmp.eq.s32.totalorder %v457, 1
        %v459 = vsel %vm458, %v450, 0.0
        %v460 = vld [vmem:[#allocation2] sm:$0x1]
        %vm461 = vcmask 523264
        %v462 = vsel %vm461, %v459, 0.0
        %v463 = vrot.slane %v462, 4
        %v464 = vadd.f32 %v462, %v463
        %v465 = vrot.slane %v464, 2
        %v466 = vadd.f32 %v464, %v465
        %v467 = vrot.slane %v466, 1
        %v468 = vadd.f32 %v466, %v467
        %v469 = vadd.f32 %v460, %v468
        %vm470 = vcmask 516096
        %471 = vst.msk [vmem:[#allocation2] sm:$0x1] %vm470, %v469
        // Predicated region
        $region45: #{image_encoder_forward.5} parent=39 // pred_check
          %p472 = pneg %p248
        $region46: #{image_encoder_forward.5} parent=39 // pred_check_branch
          %474 = sbr.rel (%p472) target = $region48
        $region47: #{image_encoder_forward.5} parent=39 // pred_region
          %v475 = vld [vmem:[#allocation2] sm:$0x1]
          %v476 = vmul.f32 %v475, 0.25
          %v477 = vsel %vm470, %v476, 0.0
          %478 = vadd.xlane.f32.xlu0 %v477
          %v479 = vpop.xlane.xlu0 %478
          %v480 = vrcp.pop 64.0
          %v481 = vmul.f32 %v479, %v480
          %v482 = vsub.f32 %v476, %v481
          %v483 = vmul.f32 %v482, %v482
          %v484 = vsel %vm470, %v483, 0.0
          %485 = vadd.xlane.f32.xlu0 %v484
          %v486 = vpop.xlane.xlu0 %485
          %v487 = vmul.f32 %v486, %v480
          %v488 = vadd.f32 %v487, 1e-05
          %v489 = vrsqrt.pop %v488
          %v490 = vmul.f32 %v482, %v489
          %v491 = vld [vmem:[%s3] sm:$0x1]
          %v492 = vmul.f32 %v490, %v491
          %v493 = vld [vmem:[%s4] sm:$0x1]
          %v494 = vadd.f32 %v492, %v493
          %495 = vst.msk [vmem:[%s238] sm:$0x1] %vm470, %v494
        $region48: #{image_encoder_forward.5} parent=39 // pred_fallthru
          _
        %s496 = sand.u32 %s151, 1
        %s497 = scalar_lea.sflag [#allocation4], %s496
        %s498 = sand.u32 %s151, 1
        %s499 = scalar_lea.vmem [#allocation3], %s498
        // Predicated region
        $region49: #{image_encoder_forward.5} parent=39 // pred_check
          %p500 = pneg %p161
        $region50: #{image_encoder_forward.5} parent=39 // pred_check_branch
          %502 = sbr.rel (%p500) target = $region52
        $region51: #{image_encoder_forward.5} parent=39 // pred_region
          %s504 = ssub.s32 16, 16
          %505 = vsyncadd %s497, %s504
          %s506 = smul.addr %s23, 16
          %s507 = scalar_lea.hbm %s5, %s506
          %s509 = sshll.u32 %s499, 4
          %s510 = int_to_ptr.vmem [resolvable:$true] %s509
          %512 = dma.vmem_to_hbm [thread:$0]  %s510, 16, %s507, %s497
        $region52: #{image_encoder_forward.5} parent=39 // pred_fallthru
          _
      $region40: #{image_encoder_forward.5} parent=5 // pred_fallthru
        _
      %p513 = scmp.le.s32.totalorder 2, %s14
      // Predicated region
      $region53: #{image_encoder_forward.5} parent=5 // pred_check
        %p514 = pneg %p513
      $region54: #{image_encoder_forward.5} parent=5 // pred_check_branch
        %516 = sbr.rel (%p514) target = $region56
      $region55: #{image_encoder_forward.5} parent=5 // pred_region
        %s517 = ssub.s32 %s14, 2
        // Predicated region
        $region57: #{image_encoder_forward.5} parent=55 // pred_check
          %p518 = pneg %p167
        $region58: #{image_encoder_forward.5} parent=55 // pred_check_branch
          %520 = sbr.rel (%p518) target = $region60
        $region59: #{image_encoder_forward.5} parent=55 // pred_region
          %s521 = sand.u32 %s152, 1
          %s522 = scalar_lea.sflag [#allocation4], %s521
          %s523 = sand.u32 %s152, 1
          %s524 = scalar_lea.vmem [#allocation3], %s523
          %525 = dma.done %s522, 16
        $region60: #{image_encoder_forward.5} parent=55 // pred_fallthru
          _
      $region56: #{image_encoder_forward.5} parent=5 // pred_fallthru
        _
    $region6: #{image_encoder_forward.5} parent=1 // loop_footer
      %s18 = sadd.s32 1, %s14
    $region7: #{image_encoder_forward.5} parent=1 // loop_footer_branch
      %13 = sbr.rel target = $region3
    $region8: #{image_encoder_forward.5} parent=1 // loop_exit
      _
    %526 = vsyncpa [#allocation4], 1
    %s527 = scalar_lea.sflag [#allocation4], 1
    %528 = vsyncpa %s527, 1

</llo_original>
